<compile_context>
chip_gen: v7x
topology: tpu7x:2x2x1
jax: 0.10.0
libtpu: 0.0.40
codegen_flags: <defaults>
</compile_context>

<pallas_src>
import math
import jax
import jax.numpy as jnp
from jax.experimental import pallas as pl
from jax.experimental.pallas import tpu as pltpu

D_IN, D_H, D_LAT = 19, 12, 6


def autoencoder_kernel(x_ref, w1_ref, b1_ref, w2_ref, b2_ref,
                       w3_ref, b3_ref, w4_ref, b4_ref,
                       enc_ref, dec_ref):
    # Lane-dense: activations are (features, batch_tile); batch rides the 128-lane axis.
    x = x_ref[...]                                                        # (19, TB)
    h1 = jnp.tanh(jnp.dot(w1_ref[...], x,
                          preferred_element_type=jnp.float32) + b1_ref[...])    # (12, TB)
    enc = jnp.tanh(jnp.dot(w2_ref[...], h1,
                           preferred_element_type=jnp.float32) + b2_ref[...])   # (6, TB)
    enc_ref[...] = enc.astype(enc_ref.dtype)

    h3 = jnp.tanh(jnp.dot(w3_ref[...], enc,
                          preferred_element_type=jnp.float32) + b3_ref[...])    # (12, TB)
    dec = jax.nn.sigmoid(jnp.dot(w4_ref[...], h3,
                                 preferred_element_type=jnp.float32) + b4_ref[...])  # (19, TB)
    dec_ref[...] = dec.astype(dec_ref.dtype)


def autoencoder_forward(x, params, *, batch_tile=None):
    """x: (B, 19) float32.
    params: (w1, b1, w2, b2, w3, b3, w4, b4) with PyTorch (out, in) weight layout and
    biases reshaped to (out, 1).
    Returns (encoder_out (B, 6), decoder_out (B, 19))."""
    w1, b1, w2, b2, w3, b3, w4, b4 = params
    B = x.shape[0]

    # Batch tile: multiple of 128 (lane width), capped so double-buffered tiles stay
    # far below even v7x's 64 MiB VMEM (per-row cost is ~(19+6+19)*4 B).
    if batch_tile is None:
        batch_tile = min(2048, pl.cdiv(B, 128) * 128)
    n_tiles = pl.cdiv(B, batch_tile)
    B_pad = n_tiles * batch_tile

    # Transposed, padded activations: (features, batch_pad).  Padding rows are garbage
    # but sliced off after the kernel.
    x_t = jnp.pad(x.T, ((0, 0), (0, B_pad - B)))

    def act_spec(d):
        return pl.BlockSpec((d, batch_tile), lambda i: (0, i))

    def const_spec(shape):
        return pl.BlockSpec(shape, lambda i: (0, 0))

    flops = 2 * B_pad * (D_IN * D_H + D_H * D_LAT + D_LAT * D_H + D_H * D_IN)
    transcendentals = B_pad * (D_H + D_LAT + D_H + D_IN)
    bytes_accessed = 4 * B_pad * (D_IN + D_LAT + D_IN)   # x in, enc + dec out

    enc_t, dec_t = pl.pallas_call(
        autoencoder_kernel,
        out_shape=(
            jax.ShapeDtypeStruct((D_LAT, B_pad), jnp.float32),
            jax.ShapeDtypeStruct((D_IN, B_pad), jnp.float32),
        ),
        grid=(n_tiles,),
        in_specs=[
            act_spec(D_IN),                                   # x (19, TB)
            const_spec((D_H, D_IN)), const_spec((D_H, 1)),    # w1, b1
            const_spec((D_LAT, D_H)), const_spec((D_LAT, 1)), # w2, b2
            const_spec((D_H, D_LAT)), const_spec((D_H, 1)),   # w3, b3
            const_spec((D_IN, D_H)), const_spec((D_IN, 1)),   # w4, b4
        ],
        out_specs=(
            act_spec(D_LAT),                                  # encoder_out (6, TB)
            act_spec(D_IN),                                   # decoder_out (19, TB)
        ),
        compiler_params=pltpu.CompilerParams(
            dimension_semantics=("parallel",),
            vmem_limit_bytes=32 * 1024 * 1024,
        ),
        cost_estimate=pl.CostEstimate(
            flops=flops,
            transcendentals=transcendentals,
            bytes_accessed=bytes_accessed,
        ),
    )(x_t, w1, b1, w2, b2, w3, b3, w4, b4)

    # Back to (batch, features) and drop padding rows.
    return enc_t.T[:B], dec_t.T[:B]


def init_params(key):
    """Deterministic PyTorch-style Linear init: U(-1/sqrt(fan_in), 1/sqrt(fan_in)).
    Weights kept in PyTorch (out, in) layout; biases as (out, 1)."""
    ks = jax.random.split(key, 8)

    def linear(kw, kb, fan_in, fan_out):
        bound = 1.0 / math.sqrt(fan_in)
        w = jax.random.uniform(kw, (fan_out, fan_in), jnp.float32, -bound, bound)
        b = jax.random.uniform(kb, (fan_out, 1), jnp.float32, -bound, bound)
        return w, b

    w1, b1 = linear(ks[0], ks[1], D_IN, D_H)     # Linear(19 -> 12)
    w2, b2 = linear(ks[2], ks[3], D_H, D_LAT)    # Linear(12 -> 6)
    w3, b3 = linear(ks[4], ks[5], D_LAT, D_H)    # Linear(6 -> 12)
    w4, b4 = linear(ks[6], ks[7], D_H, D_IN)     # Linear(12 -> 19)
    return w1, b1, w2, b2, w3, b3, w4, b4


def reference_forward(x, params):
    w1, b1, w2, b2, w3, b3, w4, b4 = params
    h1 = jnp.tanh(x @ w1.T + b1[:, 0])
    enc = jnp.tanh(h1 @ w2.T + b2[:, 0])
    h3 = jnp.tanh(enc @ w3.T + b3[:, 0])
    dec = jax.nn.sigmoid(h3 @ w4.T + b4[:, 0])
    return enc, dec


if __name__ == "__main__":
    key = jax.random.PRNGKey(0)
    kx, kp = jax.random.split(key)

    B = 256  # small example batch; not required to be a multiple of the tile (padded inside)
    x = jax.random.normal(kx, (B, D_IN), jnp.float32)
    params = init_params(kp)

    enc, dec = autoencoder_forward(x, params)
    jax.block_until_ready((enc, dec))

    enc_ref, dec_ref = reference_forward(x, params)
    assert enc.shape == (B, D_LAT) and dec.shape == (B, D_IN)
    assert jnp.allclose(enc, enc_ref, atol=1e-5, rtol=1e-5)
    assert jnp.allclose(dec, dec_ref, atol=1e-5, rtol=1e-5)

    print("KERNEL_OK")
</pallas_src>

<mosaic_0001>
module attributes {stable_mosaic.version = 11 : i64} {
  func.func @autoencoder_kernel(%arg0: i32, %arg1: memref<19x256xf32, #tpu.memory_space<vmem>>, %arg2: memref<12x19xf32, #tpu.memory_space<vmem>>, %arg3: memref<12x1xf32, #tpu.memory_space<vmem>>, %arg4: memref<6x12xf32, #tpu.memory_space<vmem>>, %arg5: memref<6x1xf32, #tpu.memory_space<vmem>>, %arg6: memref<12x6xf32, #tpu.memory_space<vmem>>, %arg7: memref<12x1xf32, #tpu.memory_space<vmem>>, %arg8: memref<19x12xf32, #tpu.memory_space<vmem>>, %arg9: memref<19x1xf32, #tpu.memory_space<vmem>>, %arg10: memref<6x256xf32, #tpu.memory_space<vmem>>, %arg11: memref<19x256xf32, #tpu.memory_space<vmem>>) attributes {dimension_semantics = [#tpu.dimension_semantics<parallel>], iteration_bounds = array<i64: 1>, scalar_prefetch = 0 : i64, scratch_operands = 0 : i64, tpu.core_type = #tpu.core_type<tc>, window_params = [{transform_indices = @transform_0, window_bounds = array<i64: 19, 256>}, {pipeline_mode = #tpu.pipeline_mode<synchronous>, transform_indices = @transform_1, window_bounds = array<i64: 12, 19>}, {pipeline_mode = #tpu.pipeline_mode<synchronous>, transform_indices = @transform_2, window_bounds = array<i64: 12, 1>}, {pipeline_mode = #tpu.pipeline_mode<synchronous>, transform_indices = @transform_3, window_bounds = array<i64: 6, 12>}, {pipeline_mode = #tpu.pipeline_mode<synchronous>, transform_indices = @transform_4, window_bounds = array<i64: 6, 1>}, {pipeline_mode = #tpu.pipeline_mode<synchronous>, transform_indices = @transform_5, window_bounds = array<i64: 12, 6>}, {pipeline_mode = #tpu.pipeline_mode<synchronous>, transform_indices = @transform_6, window_bounds = array<i64: 12, 1>}, {pipeline_mode = #tpu.pipeline_mode<synchronous>, transform_indices = @transform_7, window_bounds = array<i64: 19, 12>}, {pipeline_mode = #tpu.pipeline_mode<synchronous>, transform_indices = @transform_8, window_bounds = array<i64: 19, 1>}, {transform_indices = @transform_9, window_bounds = array<i64: 6, 256>}, {transform_indices = @transform_10, window_bounds = array<i64: 19, 256>}]} {
    %c0 = arith.constant 0 : index
    %c0_0 = arith.constant 0 : index
    %0 = vector.load %arg1[%c0, %c0_0] : memref<19x256xf32, #tpu.memory_space<vmem>>, vector<19x256xf32>
    %c0_1 = arith.constant 0 : index
    %c0_2 = arith.constant 0 : index
    %1 = vector.load %arg2[%c0_1, %c0_2] : memref<12x19xf32, #tpu.memory_space<vmem>>, vector<12x19xf32>
    %cst = arith.constant dense<0.000000e+00> : vector<12x256xf32>
    %2 = tpu.matmul %1, %0, %cst {dimension_numbers = #tpu.dot_dimension_numbers<[1], [0], [0], [1], [0, 0, 1, 1], [], []>} : vector<12x19xf32>, vector<19x256xf32>, vector<12x256xf32> -> vector<12x256xf32>
    %c0_3 = arith.constant 0 : index
    %c0_4 = arith.constant 0 : index
    %3 = vector.load %arg3[%c0_3, %c0_4] : memref<12x1xf32, #tpu.memory_space<vmem>>, vector<12x1xf32>
    %4 = vector.broadcast %3 : vector<12x1xf32> to vector<12x256xf32>
    %5 = arith.addf %2, %4 : vector<12x256xf32>
    %6 = math.tanh %5 : vector<12x256xf32>
    %c0_5 = arith.constant 0 : index
    %c0_6 = arith.constant 0 : index
    %7 = vector.load %arg4[%c0_5, %c0_6] : memref<6x12xf32, #tpu.memory_space<vmem>>, vector<6x12xf32>
    %cst_7 = arith.constant dense<0.000000e+00> : vector<6x256xf32>
    %8 = tpu.matmul %7, %6, %cst_7 {dimension_numbers = #tpu.dot_dimension_numbers<[1], [0], [0], [1], [0, 0, 1, 1], [], []>} : vector<6x12xf32>, vector<12x256xf32>, vector<6x256xf32> -> vector<6x256xf32>
    %c0_8 = arith.constant 0 : index
    %c0_9 = arith.constant 0 : index
    %9 = vector.load %arg5[%c0_8, %c0_9] : memref<6x1xf32, #tpu.memory_space<vmem>>, vector<6x1xf32>
    %10 = vector.broadcast %9 : vector<6x1xf32> to vector<6x256xf32>
    %11 = arith.addf %8, %10 : vector<6x256xf32>
    %12 = math.tanh %11 : vector<6x256xf32>
    %c0_10 = arith.constant 0 : index
    %c0_11 = arith.constant 0 : index
    %13 = vector.load %arg10[%c0_10, %c0_11] : memref<6x256xf32, #tpu.memory_space<vmem>>, vector<6x256xf32>
    tpu.vector_store %arg10[%c0_10, %c0_11], %12 {strides = array<i32>} : memref<6x256xf32, #tpu.memory_space<vmem>>, vector<6x256xf32>,
    %c0_12 = arith.constant 0 : index
    %c0_13 = arith.constant 0 : index
    %14 = vector.load %arg6[%c0_12, %c0_13] : memref<12x6xf32, #tpu.memory_space<vmem>>, vector<12x6xf32>
    %cst_14 = arith.constant dense<0.000000e+00> : vector<12x256xf32>
    %15 = tpu.matmul %14, %12, %cst_14 {dimension_numbers = #tpu.dot_dimension_numbers<[1], [0], [0], [1], [0, 0, 1, 1], [], []>} : vector<12x6xf32>, vector<6x256xf32>, vector<12x256xf32> -> vector<12x256xf32>
    %c0_15 = arith.constant 0 : index
    %c0_16 = arith.constant 0 : index
    %16 = vector.load %arg7[%c0_15, %c0_16] : memref<12x1xf32, #tpu.memory_space<vmem>>, vector<12x1xf32>
    %17 = vector.broadcast %16 : vector<12x1xf32> to vector<12x256xf32>
    %18 = arith.addf %15, %17 : vector<12x256xf32>
    %19 = math.tanh %18 : vector<12x256xf32>
    %c0_17 = arith.constant 0 : index
    %c0_18 = arith.constant 0 : index
    %20 = vector.load %arg8[%c0_17, %c0_18] : memref<19x12xf32, #tpu.memory_space<vmem>>, vector<19x12xf32>
    %cst_19 = arith.constant dense<0.000000e+00> : vector<19x256xf32>
    %21 = tpu.matmul %20, %19, %cst_19 {dimension_numbers = #tpu.dot_dimension_numbers<[1], [0], [0], [1], [0, 0, 1, 1], [], []>} : vector<19x12xf32>, vector<12x256xf32>, vector<19x256xf32> -> vector<19x256xf32>
    %c0_20 = arith.constant 0 : index
    %c0_21 = arith.constant 0 : index
    %22 = vector.load %arg9[%c0_20, %c0_21] : memref<19x1xf32, #tpu.memory_space<vmem>>, vector<19x1xf32>
    %23 = vector.broadcast %22 : vector<19x1xf32> to vector<19x256xf32>
    %24 = arith.addf %21, %23 : vector<19x256xf32>
    %25 = arith.negf %24 : vector<19x256xf32>
    %26 = math.exp %25 : vector<19x256xf32>
    %cst_22 = arith.constant 1.000000e+00 : f32
    %27 = vector.broadcast %cst_22 : f32 to vector<19x256xf32>
    %28 = arith.addf %27, %26 : vector<19x256xf32>
    %29 = arith.divf %27, %28 : vector<19x256xf32>
    %c0_23 = arith.constant 0 : index
    %c0_24 = arith.constant 0 : index
    %30 = vector.load %arg11[%c0_23, %c0_24] : memref<19x256xf32, #tpu.memory_space<vmem>>, vector<19x256xf32>
    tpu.vector_store %arg11[%c0_23, %c0_24], %29 {strides = array<i32>} : memref<19x256xf32, #tpu.memory_space<vmem>>, vector<19x256xf32>,
    return
  }
  func.func @transform_0(%arg0: i32) -> (i32, i32) {
    %c0_i32 = arith.constant 0 : i32
    %c0_i32_0 = arith.constant 0 : i32
    return %c0_i32, %arg0 : i32, i32
  }
  func.func @transform_1(%arg0: i32) -> (i32, i32) {
    %c0_i32 = arith.constant 0 : i32
    %c0_i32_0 = arith.constant 0 : i32
    %c0_i32_1 = arith.constant 0 : i32
    return %c0_i32, %c0_i32_0 : i32, i32
  }
  func.func @transform_2(%arg0: i32) -> (i32, i32) {
    %c0_i32 = arith.constant 0 : i32
    %c0_i32_0 = arith.constant 0 : i32
    %c0_i32_1 = arith.constant 0 : i32
    return %c0_i32, %c0_i32_0 : i32, i32
  }
  func.func @transform_3(%arg0: i32) -> (i32, i32) {
    %c0_i32 = arith.constant 0 : i32
    %c0_i32_0 = arith.constant 0 : i32
    %c0_i32_1 = arith.constant 0 : i32
    return %c0_i32, %c0_i32_0 : i32, i32
  }
  func.func @transform_4(%arg0: i32) -> (i32, i32) {
    %c0_i32 = arith.constant 0 : i32
    %c0_i32_0 = arith.constant 0 : i32
    %c0_i32_1 = arith.constant 0 : i32
    return %c0_i32, %c0_i32_0 : i32, i32
  }
  func.func @transform_5(%arg0: i32) -> (i32, i32) {
    %c0_i32 = arith.constant 0 : i32
    %c0_i32_0 = arith.constant 0 : i32
    %c0_i32_1 = arith.constant 0 : i32
    return %c0_i32, %c0_i32_0 : i32, i32
  }
  func.func @transform_6(%arg0: i32) -> (i32, i32) {
    %c0_i32 = arith.constant 0 : i32
    %c0_i32_0 = arith.constant 0 : i32
    %c0_i32_1 = arith.constant 0 : i32
    return %c0_i32, %c0_i32_0 : i32, i32
  }
  func.func @transform_7(%arg0: i32) -> (i32, i32) {
    %c0_i32 = arith.constant 0 : i32
    %c0_i32_0 = arith.constant 0 : i32
    %c0_i32_1 = arith.constant 0 : i32
    return %c0_i32, %c0_i32_0 : i32, i32
  }
  func.func @transform_8(%arg0: i32) -> (i32, i32) {
    %c0_i32 = arith.constant 0 : i32
    %c0_i32_0 = arith.constant 0 : i32
    %c0_i32_1 = arith.constant 0 : i32
    return %c0_i32, %c0_i32_0 : i32, i32
  }
  func.func @transform_9(%arg0: i32) -> (i32, i32) {
    %c0_i32 = arith.constant 0 : i32
    %c0_i32_0 = arith.constant 0 : i32
    return %c0_i32, %arg0 : i32, i32
  }
  func.func @transform_10(%arg0: i32) -> (i32, i32) {
    %c0_i32 = arith.constant 0 : i32
    %c0_i32_0 = arith.constant 0 : i32
    return %c0_i32, %arg0 : i32, i32
  }
}

</mosaic_0001>

<llo_original>
// kernel: tpu_custom_call.1
$region0: #{tpu_custom_call.1}
  #allocation0 [shape = 'u32[]', space=smem, size = 0x4, offset = 0x4, fixed_abs, tag = 'smem constant byte address 0x4 - core index']
  #allocation1 [shape = 'u32[144,128]{1,0:T(1,128)}', space=vmem, size = 0x12000, scoped, tag = 'internal scratch']
  %s0 = inlined_call_operand.vmem [shape: f32[19,256], index: 0, kind: input, shape index: {}]
  %s1 = inlined_call_operand.vmem [shape: f32[12,19], index: 1, kind: input, shape index: {}]
  %s2 = inlined_call_operand.vmem [shape: f32[12,1], index: 2, kind: input, shape index: {}]
  %s3 = inlined_call_operand.vmem [shape: f32[6,12], index: 3, kind: input, shape index: {}]
  %s4 = inlined_call_operand.vmem [shape: f32[6,1], index: 4, kind: input, shape index: {}]
  %s5 = inlined_call_operand.vmem [shape: f32[12,6], index: 5, kind: input, shape index: {}]
  %s6 = inlined_call_operand.vmem [shape: f32[12,1], index: 6, kind: input, shape index: {}]
  %s7 = inlined_call_operand.vmem [shape: f32[19,12], index: 7, kind: input, shape index: {}]
  %s8 = inlined_call_operand.vmem [shape: f32[19,1], index: 8, kind: input, shape index: {}]
  %s9 = inlined_call_operand.hbm [shape: f32[6,256], index: 9, kind: output, shape index: {0}]
  %s10 = inlined_call_operand.hbm [shape: f32[19,256], index: 10, kind: output, shape index: {1}]
  %11 = xla_tuple %s9, %s10
  %s12 = sld [smem:[#allocation0]]
  $region54: #{tpu_custom_call.1} parent=0
    _
  %s14 = ssub.s32 1, %s12
  %s15 = scalar_select 0, %s14, %s12
  $region1: #{tpu_custom_call.1} parent=0
    #allocation2 [shape = 'u8[8192]{0}', space=vmem, size = 0x2000, scoped, tag = 'output window, operand 0, single buffered']
    #allocation3 [shape = 's32[1]{0}', space=sflag, size = 0x4, scoped, tag = 'scoped memory for tpu_custom_call.1']
    #allocation4 [shape = 'u8[24576]{0}', space=vmem, size = 0x6000, scoped, tag = 'output window, operand 1, single buffered']
    #allocation5 [shape = 's32[1]{0}', space=sflag, size = 0x4, scoped, tag = 'scoped memory for tpu_custom_call.1']
    %16 = vsyncpa [#allocation3], 0
    %17 = vsyncpa [#allocation5], 0
    // Predicated region
    $region2: #{tpu_custom_call.1} parent=1 // pred_check
      _
    $region3: #{tpu_custom_call.1} parent=1 // pred_check_branch
      %19 = sbr.rel (0) target = $region5
    $region4: #{tpu_custom_call.1} parent=1 // pred_region
      _
    $region5: #{tpu_custom_call.1} parent=1 // pred_fallthru
      _
    // Predicated region
    $region6: #{tpu_custom_call.1} parent=1 // pred_check
      _
    $region7: #{tpu_custom_call.1} parent=1 // pred_check_branch
      %21 = sbr.rel (0) target = $region9
    $region8: #{tpu_custom_call.1} parent=1 // pred_region
      _
    $region9: #{tpu_custom_call.1} parent=1 // pred_fallthru
      _
    // Predicated region
    $region10: #{tpu_custom_call.1} parent=1 // pred_check
      _
    $region11: #{tpu_custom_call.1} parent=1 // pred_check_branch
      %23 = sbr.rel (0) target = $region13
    $region12: #{tpu_custom_call.1} parent=1 // pred_region
      _
    $region13: #{tpu_custom_call.1} parent=1 // pred_fallthru
      _
    // Predicated region
    $region14: #{tpu_custom_call.1} parent=1 // pred_check
      _
    $region15: #{tpu_custom_call.1} parent=1 // pred_check_branch
      %25 = sbr.rel (0) target = $region17
    $region16: #{tpu_custom_call.1} parent=1 // pred_region
      _
    $region17: #{tpu_custom_call.1} parent=1 // pred_fallthru
      _
    // Predicated region
    $region18: #{tpu_custom_call.1} parent=1 // pred_check
      _
    $region19: #{tpu_custom_call.1} parent=1 // pred_check_branch
      %27 = sbr.rel (0) target = $region21
    $region20: #{tpu_custom_call.1} parent=1 // pred_region
      _
    $region21: #{tpu_custom_call.1} parent=1 // pred_fallthru
      _
    // Predicated region
    $region22: #{tpu_custom_call.1} parent=1 // pred_check
      _
    $region23: #{tpu_custom_call.1} parent=1 // pred_check_branch
      %29 = sbr.rel (0) target = $region25
    $region24: #{tpu_custom_call.1} parent=1 // pred_region
      _
    $region25: #{tpu_custom_call.1} parent=1 // pred_fallthru
      _
    // Predicated region
    $region26: #{tpu_custom_call.1} parent=1 // pred_check
      _
    $region27: #{tpu_custom_call.1} parent=1 // pred_check_branch
      %31 = sbr.rel (0) target = $region29
    $region28: #{tpu_custom_call.1} parent=1 // pred_region
      _
    $region29: #{tpu_custom_call.1} parent=1 // pred_fallthru
      _
    // Predicated region
    $region30: #{tpu_custom_call.1} parent=1 // pred_check
      _
    $region31: #{tpu_custom_call.1} parent=1 // pred_check_branch
      %33 = sbr.rel (0) target = $region33
    $region32: #{tpu_custom_call.1} parent=1 // pred_region
      _
    $region33: #{tpu_custom_call.1} parent=1 // pred_fallthru
      _
    // Predicated region
    $region34: #{tpu_custom_call.1} parent=1 // pred_check
      _
    $region35: #{tpu_custom_call.1} parent=1 // pred_check_branch
      %35 = sbr.rel (0) target = $region37
    $region36: #{tpu_custom_call.1} parent=1 // pred_region
      _
    $region37: #{tpu_custom_call.1} parent=1 // pred_fallthru
      _
    %v36 = vld [vmem:[%s0] sm:$0xff]
    %v37 = vld [vmem:[%s0 + $0x8] sm:$0xff]
    %v38 = vld [vmem:[%s0 + $0x10] sm:$0xff]
    %v39 = vld [vmem:[%s0 + $0x18] sm:$0xff]
    %v40 = vld [vmem:[%s0 + $0x20] sm:$0x7]
    %v41 = vld [vmem:[%s0 + $0x28] sm:$0x7]
    %v42 = vld [vmem:[%s1] sm:$0xff]
    %v43 = vld [vmem:[%s1 + $0x8] sm:$0xf]
    %v44 = vld [vmem:[%s2] sm:$0xff]
    %v45 = vld [vmem:[%s2 + $0x8] sm:$0xf]
    %47 = vset.pattern.permute.xlu0 0
    %48 = vperm.xlu0 %47, %v44
    %v49 = vpop.permute.xlu0 %48
    %52 = vset.pattern.permute.xlu0 0
    %53 = vperm.xlu0 %52, %v45
    %v54 = vpop.permute.xlu0 %53
    %vm56 = vcmask 154624
    %v58 = vsel %vm56, %v42, 0
    %v61 = vsel %vm56, %v43, 0
    %vm63 = vcmask 1042432
    %v65 = vsel %vm63, %v40, 0
    %v68 = vsel %vm63, %v41, 0
    %70 = vmatprep.subr.mxu0 %v37
    %71 = vmatpush1.msra.mxu0 %v36
    %72 = vmatprep.subr.mxu0 %v39
    %73 = vmatpush1.msra.mxu0 %v38
    %74 = vmatprep.subr.mxu0 %v68
    %75 = vmatpush1.msra.mxu0 %v65
    %76 = vmatprep.subr.mxu0 0.0
    %77 = vmatpush1.msra.mxu0 0.0
    %78 = vmatprep.subr.mxu0 0.0
    %79 = vmatpush1.msra.mxu0 0.0
    %80 = vmatprep.subr.mxu0 0.0
    %81 = vmatpush1.msra.mxu0 0.0
    %82 = vmatprep.subr.mxu0 0.0
    %83 = vmatpush1.msra.mxu0 0.0
    %84 = vmatprep.subr.mxu0 0.0
    %85 = vmatpush1.msra.mxu0 0.0
    %86 = vmatprep.subr.mxu0 0.0
    %87 = vmatpush1.msra.mxu0 0.0
    %88 = vmatprep.subr.mxu0 0.0
    %89 = vmatpush1.msra.mxu0 0.0
    %90 = vmatprep.subr.mxu0 0.0
    %91 = vmatpush1.msra.mxu0 0.0
    %92 = vmatprep.subr.mxu0 0.0
    %93 = vmatpush1.msra.mxu0 0.0
    %94 = vmatprep.subr.mxu0 0.0
    %95 = vmatpush1.msra.mxu0 0.0
    %96 = vmatprep.subr.mxu0 0.0
    %97 = vmatpush1.msra.mxu0 0.0
    %98 = vmatprep.subr.mxu0 0.0
    %99 = vmatpush1.msra.mxu0 0.0
    %100 = vmatprep.subr.mxu0 0.0
    %101 = vmatpush1.msra.mxu0 0.0
    %102 = vmatprep.subr.mxu0 0.0
    %103 = vmatpush1.msra.mxu0 0.0
    %104 = vmatprep.subr.mxu0 0.0
    %105 = vmatpush1.msra.mxu0 0.0
    %106 = vmatprep.subr.mxu0 0.0
    %107 = vmatpush1.msra.mxu0 0.0
    %108 = vmatprep.subr.mxu0 0.0
    %109 = vmatpush1.msra.mxu0 0.0
    %110 = vmatprep.subr.mxu0 0.0
    %111 = vmatpush1.msra.mxu0 0.0
    %112 = vmatprep.subr.mxu0 0.0
    %113 = vmatpush1.msra.mxu0 0.0
    %114 = vmatprep.subr.mxu0 0.0
    %115 = vmatpush1.msra.mxu0 0.0
    %116 = vmatprep.subr.mxu0 0.0
    %117 = vmatpush1.msra.mxu0 0.0
    %118 = vmatprep.subr.mxu0 0.0
    %119 = vmatpush1.msra.mxu0 0.0
    %120 = vmatprep.subr.mxu0 0.0
    %121 = vmatpush1.msra.mxu0 0.0
    %122 = vmatprep.subr.mxu0 0.0
    %123 = vmatpush1.msra.mxu0 0.0
    %124 = vmatprep.subr.mxu0 0.0
    %125 = vmatpush1.msra.mxu0 0.0
    %126 = vmatprep.subr.mxu0 0.0
    %127 = vmatpush1.msra.mxu0 0.0
    %128 = vmatprep.subr.mxu0 0.0
    %129 = vmatpush1.msra.mxu0 0.0
    %130 = vmatprep.subr.mxu0 0.0
    %131 = vmatpush1.msra.mxu0 0.0
    %132 = vmatprep.subr.mxu0 0.0
    %133 = vmatpush1.msra.mxu0 0.0
    %134 = vmatprep.mubr.f32.mxu0 0.0
    %135 = vmatmul.mubr.f32.gmra.mrb[0].mxu0 %v58
    %v136 = vpop.f32.mrb[0].mxu0
    %v137 = vadd.f32 %v49, %v136
    %v138 = vpop.f32.mrb[0].mxu0
    %v139 = vadd.f32 %v49, %v138
    %140 = vmatprep.mubr.f32.mxu0 0.0
    %141 = vmatmul.mubr.f32.gmra.mrb[0].mxu0 %v61
    %v142 = vpop.f32.mrb[0].mxu0
    %v143 = vadd.f32 %v54, %v142
    %v144 = vpop.f32.mrb[0].mxu0
    %v145 = vadd.f32 %v54, %v144
    %146 = vdwg.mxu0
    %v147 = vtanh.pop %v137
    %v148 = vtanh.pop %v139
    %v149 = vtanh.pop %v143
    %v150 = vtanh.pop %v145
    %v151 = vld [vmem:[%s3] sm:$0x3f]
    %v152 = vld [vmem:[%s4] sm:$0x3f]
    %154 = vset.pattern.permute.xlu0 0
    %155 = vperm.xlu0 %154, %v152
    %v156 = vpop.permute.xlu0 %155
    %vm158 = vcmask 97280
    %v160 = vsel %vm158, %v151, 0
    %vm162 = vcmask 1043456
    %v164 = vsel %vm162, %v149, 0
    %v167 = vsel %vm162, %v150, 0
    %169 = vmatprep.subr.mxu0 %v148
    %170 = vmatpush1.msra.mxu0 %v147
    %171 = vmatprep.subr.mxu0 %v167
    %172 = vmatpush1.msra.mxu0 %v164
    %173 = vmatprep.subr.mxu0 0.0
    %174 = vmatpush1.msra.mxu0 0.0
    %175 = vmatprep.subr.mxu0 0.0
    %176 = vmatpush1.msra.mxu0 0.0
    %177 = vmatprep.subr.mxu0 0.0
    %178 = vmatpush1.msra.mxu0 0.0
    %179 = vmatprep.subr.mxu0 0.0
    %180 = vmatpush1.msra.mxu0 0.0
    %181 = vmatprep.subr.mxu0 0.0
    %182 = vmatpush1.msra.mxu0 0.0
    %183 = vmatprep.subr.mxu0 0.0
    %184 = vmatpush1.msra.mxu0 0.0
    %185 = vmatprep.subr.mxu0 0.0
    %186 = vmatpush1.msra.mxu0 0.0
    %187 = vmatprep.subr.mxu0 0.0
    %188 = vmatpush1.msra.mxu0 0.0
    %189 = vmatprep.subr.mxu0 0.0
    %190 = vmatpush1.msra.mxu0 0.0
    %191 = vmatprep.subr.mxu0 0.0
    %192 = vmatpush1.msra.mxu0 0.0
    %193 = vmatprep.subr.mxu0 0.0
    %194 = vmatpush1.msra.mxu0 0.0
    %195 = vmatprep.subr.mxu0 0.0
    %196 = vmatpush1.msra.mxu0 0.0
    %197 = vmatprep.subr.mxu0 0.0
    %198 = vmatpush1.msra.mxu0 0.0
    %199 = vmatprep.subr.mxu0 0.0
    %200 = vmatpush1.msra.mxu0 0.0
    %201 = vmatprep.subr.mxu0 0.0
    %202 = vmatpush1.msra.mxu0 0.0
    %203 = vmatprep.subr.mxu0 0.0
    %204 = vmatpush1.msra.mxu0 0.0
    %205 = vmatprep.subr.mxu0 0.0
    %206 = vmatpush1.msra.mxu0 0.0
    %207 = vmatprep.subr.mxu0 0.0
    %208 = vmatpush1.msra.mxu0 0.0
    %209 = vmatprep.subr.mxu0 0.0
    %210 = vmatpush1.msra.mxu0 0.0
    %211 = vmatprep.subr.mxu0 0.0
    %212 = vmatpush1.msra.mxu0 0.0
    %213 = vmatprep.subr.mxu0 0.0
    %214 = vmatpush1.msra.mxu0 0.0
    %215 = vmatprep.subr.mxu0 0.0
    %216 = vmatpush1.msra.mxu0 0.0
    %217 = vmatprep.subr.mxu0 0.0
    %218 = vmatpush1.msra.mxu0 0.0
    %219 = vmatprep.subr.mxu0 0.0
    %220 = vmatpush1.msra.mxu0 0.0
    %221 = vmatprep.subr.mxu0 0.0
    %222 = vmatpush1.msra.mxu0 0.0
    %223 = vmatprep.subr.mxu0 0.0
    %224 = vmatpush1.msra.mxu0 0.0
    %225 = vmatprep.subr.mxu0 0.0
    %226 = vmatpush1.msra.mxu0 0.0
    %227 = vmatprep.subr.mxu0 0.0
    %228 = vmatpush1.msra.mxu0 0.0
    %229 = vmatprep.subr.mxu0 0.0
    %230 = vmatpush1.msra.mxu0 0.0
    %231 = vmatprep.subr.mxu0 0.0
    %232 = vmatpush1.msra.mxu0 0.0
    %233 = vmatprep.mubr.f32.mxu0 0.0
    %234 = vmatmul.mubr.f32.gmra.mrb[0].mxu0 %v160
    %v235 = vpop.f32.mrb[0].mxu0
    %v236 = vadd.f32 %v156, %v235
    %v237 = vpop.f32.mrb[0].mxu0
    %v238 = vadd.f32 %v156, %v237
    %239 = vdwg.mxu0
    %v240 = vtanh.pop %v236
    %v241 = vtanh.pop %v238
    %242 = vst [vmem:[#allocation2] sm:$0x3f] %v240
    %243 = vst [vmem:[#allocation2 + $0x8] sm:$0x3f] %v241
    %v244 = vld [vmem:[%s5] sm:$0xff]
    %v245 = vld [vmem:[%s5 + $0x8] sm:$0xf]
    %v246 = vld [vmem:[%s6] sm:$0xff]
    %v247 = vld [vmem:[%s6 + $0x8] sm:$0xf]
    %249 = vset.pattern.permute.xlu0 0
    %250 = vperm.xlu0 %249, %v246
    %v251 = vpop.permute.xlu0 %250
    %254 = vset.pattern.permute.xlu0 0
    %255 = vperm.xlu0 %254, %v247
    %v256 = vpop.permute.xlu0 %255
    %vm258 = vcmask 48128
    %v260 = vsel %vm258, %v244, 0
    %v263 = vsel %vm258, %v245, 0
    %vm265 = vcmask 1045504
    %v267 = vsel %vm265, %v240, 0
    %v270 = vsel %vm265, %v241, 0
    %272 = vmatprep.subr.mxu0 %v270
    %273 = vmatpush1.msra.mxu0 %v267
    %274 = vmatprep.subr.mxu0 0.0
    %275 = vmatpush1.msra.mxu0 0.0
    %276 = vmatprep.subr.mxu0 0.0
    %277 = vmatpush1.msra.mxu0 0.0
    %278 = vmatprep.subr.mxu0 0.0
    %279 = vmatpush1.msra.mxu0 0.0
    %280 = vmatprep.subr.mxu0 0.0
    %281 = vmatpush1.msra.mxu0 0.0
    %282 = vmatprep.subr.mxu0 0.0
    %283 = vmatpush1.msra.mxu0 0.0
    %284 = vmatprep.subr.mxu0 0.0
    %285 = vmatpush1.msra.mxu0 0.0
    %286 = vmatprep.subr.mxu0 0.0
    %287 = vmatpush1.msra.mxu0 0.0
    %288 = vmatprep.subr.mxu0 0.0
    %289 = vmatpush1.msra.mxu0 0.0
    %290 = vmatprep.subr.mxu0 0.0
    %291 = vmatpush1.msra.mxu0 0.0
    %292 = vmatprep.subr.mxu0 0.0
    %293 = vmatpush1.msra.mxu0 0.0
    %294 = vmatprep.subr.mxu0 0.0
    %295 = vmatpush1.msra.mxu0 0.0
    %296 = vmatprep.subr.mxu0 0.0
    %297 = vmatpush1.msra.mxu0 0.0
    %298 = vmatprep.subr.mxu0 0.0
    %299 = vmatpush1.msra.mxu0 0.0
    %300 = vmatprep.subr.mxu0 0.0
    %301 = vmatpush1.msra.mxu0 0.0
    %302 = vmatprep.subr.mxu0 0.0
    %303 = vmatpush1.msra.mxu0 0.0
    %304 = vmatprep.subr.mxu0 0.0
    %305 = vmatpush1.msra.mxu0 0.0
    %306 = vmatprep.subr.mxu0 0.0
    %307 = vmatpush1.msra.mxu0 0.0
    %308 = vmatprep.subr.mxu0 0.0
    %309 = vmatpush1.msra.mxu0 0.0
    %310 = vmatprep.subr.mxu0 0.0
    %311 = vmatpush1.msra.mxu0 0.0
    %312 = vmatprep.subr.mxu0 0.0
    %313 = vmatpush1.msra.mxu0 0.0
    %314 = vmatprep.subr.mxu0 0.0
    %315 = vmatpush1.msra.mxu0 0.0
    %316 = vmatprep.subr.mxu0 0.0
    %317 = vmatpush1.msra.mxu0 0.0
    %318 = vmatprep.subr.mxu0 0.0
    %319 = vmatpush1.msra.mxu0 0.0
    %320 = vmatprep.subr.mxu0 0.0
    %321 = vmatpush1.msra.mxu0 0.0
    %322 = vmatprep.subr.mxu0 0.0
    %323 = vmatpush1.msra.mxu0 0.0
    %324 = vmatprep.subr.mxu0 0.0
    %325 = vmatpush1.msra.mxu0 0.0
    %326 = vmatprep.subr.mxu0 0.0
    %327 = vmatpush1.msra.mxu0 0.0
    %328 = vmatprep.subr.mxu0 0.0
    %329 = vmatpush1.msra.mxu0 0.0
    %330 = vmatprep.subr.mxu0 0.0
    %331 = vmatpush1.msra.mxu0 0.0
    %332 = vmatprep.subr.mxu0 0.0
    %333 = vmatpush1.msra.mxu0 0.0
    %334 = vmatprep.subr.mxu0 0.0
    %335 = vmatpush1.msra.mxu0 0.0
    %336 = vmatprep.mubr.f32.mxu0 0.0
    %337 = vmatmul.mubr.f32.gmra.mrb[0].mxu0 %v260
    %v338 = vpop.f32.mrb[0].mxu0
    %v339 = vadd.f32 %v251, %v338
    %v340 = vpop.f32.mrb[0].mxu0
    %v341 = vadd.f32 %v251, %v340
    %342 = vmatprep.mubr.f32.mxu0 0.0
    %343 = vmatmul.mubr.f32.gmra.mrb[0].mxu0 %v263
    %v344 = vpop.f32.mrb[0].mxu0
    %v345 = vadd.f32 %v256, %v344
    %v346 = vpop.f32.mrb[0].mxu0
    %v347 = vadd.f32 %v256, %v346
    %348 = vdwg.mxu0
    %v349 = vtanh.pop %v339
    %v350 = vtanh.pop %v341
    %v351 = vtanh.pop %v345
    %v352 = vtanh.pop %v347
    %v353 = vld [vmem:[%s7] sm:$0xff]
    %v354 = vld [vmem:[%s7 + $0x8] sm:$0xff]
    %v355 = vld [vmem:[%s7 + $0x10] sm:$0x7]
    %v356 = vld [vmem:[%s8] sm:$0xff]
    %v357 = vld [vmem:[%s8 + $0x8] sm:$0xff]
    %v358 = vld [vmem:[%s8 + $0x10] sm:$0x7]
    %360 = vset.pattern.permute.xlu0 0
    %361 = vperm.xlu0 %360, %v356
    %v362 = vpop.permute.xlu0 %361
    %365 = vset.pattern.permute.xlu0 0
    %366 = vperm.xlu0 %365, %v357
    %v367 = vpop.permute.xlu0 %366
    %370 = vset.pattern.permute.xlu0 0
    %371 = vperm.xlu0 %370, %v358
    %v372 = vpop.permute.xlu0 %371
    %v375 = vsel %vm158, %v353, 0
    %v378 = vsel %vm158, %v354, 0
    %v381 = vsel %vm158, %v355, 0
    %v384 = vsel %vm162, %v351, 0
    %v387 = vsel %vm162, %v352, 0
    %389 = vmatprep.subr.mxu0 %v350
    %390 = vmatpush1.msra.mxu0 %v349
    %391 = vmatprep.subr.mxu0 %v387
    %392 = vmatpush1.msra.mxu0 %v384
    %393 = vmatprep.subr.mxu0 0.0
    %394 = vmatpush1.msra.mxu0 0.0
    %395 = vmatprep.subr.mxu0 0.0
    %396 = vmatpush1.msra.mxu0 0.0
    %397 = vmatprep.subr.mxu0 0.0
    %398 = vmatpush1.msra.mxu0 0.0
    %399 = vmatprep.subr.mxu0 0.0
    %400 = vmatpush1.msra.mxu0 0.0
    %401 = vmatprep.subr.mxu0 0.0
    %402 = vmatpush1.msra.mxu0 0.0
    %403 = vmatprep.subr.mxu0 0.0
    %404 = vmatpush1.msra.mxu0 0.0
    %405 = vmatprep.subr.mxu0 0.0
    %406 = vmatpush1.msra.mxu0 0.0
    %407 = vmatprep.subr.mxu0 0.0
    %408 = vmatpush1.msra.mxu0 0.0
    %409 = vmatprep.subr.mxu0 0.0
    %410 = vmatpush1.msra.mxu0 0.0
    %411 = vmatprep.subr.mxu0 0.0
    %412 = vmatpush1.msra.mxu0 0.0
    %413 = vmatprep.subr.mxu0 0.0
    %414 = vmatpush1.msra.mxu0 0.0
    %415 = vmatprep.subr.mxu0 0.0
    %416 = vmatpush1.msra.mxu0 0.0
    %417 = vmatprep.subr.mxu0 0.0
    %418 = vmatpush1.msra.mxu0 0.0
    %419 = vmatprep.subr.mxu0 0.0
    %420 = vmatpush1.msra.mxu0 0.0
    %421 = vmatprep.subr.mxu0 0.0
    %422 = vmatpush1.msra.mxu0 0.0
    %423 = vmatprep.subr.mxu0 0.0
    %424 = vmatpush1.msra.mxu0 0.0
    %425 = vmatprep.subr.mxu0 0.0
    %426 = vmatpush1.msra.mxu0 0.0
    %427 = vmatprep.subr.mxu0 0.0
    %428 = vmatpush1.msra.mxu0 0.0
    %429 = vmatprep.subr.mxu0 0.0
    %430 = vmatpush1.msra.mxu0 0.0
    %431 = vmatprep.subr.mxu0 0.0
    %432 = vmatpush1.msra.mxu0 0.0
    %433 = vmatprep.subr.mxu0 0.0
    %434 = vmatpush1.msra.mxu0 0.0
    %435 = vmatprep.subr.mxu0 0.0
    %436 = vmatpush1.msra.mxu0 0.0
    %437 = vmatprep.subr.mxu0 0.0
    %438 = vmatpush1.msra.mxu0 0.0
    %439 = vmatprep.subr.mxu0 0.0
    %440 = vmatpush1.msra.mxu0 0.0
    %441 = vmatprep.subr.mxu0 0.0
    %442 = vmatpush1.msra.mxu0 0.0
    %443 = vmatprep.subr.mxu0 0.0
    %444 = vmatpush1.msra.mxu0 0.0
    %445 = vmatprep.subr.mxu0 0.0
    %446 = vmatpush1.msra.mxu0 0.0
    %447 = vmatprep.subr.mxu0 0.0
    %448 = vmatpush1.msra.mxu0 0.0
    %449 = vmatprep.subr.mxu0 0.0
    %450 = vmatpush1.msra.mxu0 0.0
    %451 = vmatprep.subr.mxu0 0.0
    %452 = vmatpush1.msra.mxu0 0.0
    %453 = vmatprep.mubr.f32.mxu0 0.0
    %454 = vmatmul.mubr.f32.gmra.mrb[0].mxu0 %v375
    %v455 = vpop.f32.mrb[0].mxu0
    %v456 = vadd.f32 %v362, %v455
    %v457 = vpop.f32.mrb[0].mxu0
    %v458 = vadd.f32 %v362, %v457
    %459 = vmatprep.mubr.f32.mxu0 0.0
    %460 = vmatmul.mubr.f32.gmra.mrb[0].mxu0 %v378
    %v461 = vpop.f32.mrb[0].mxu0
    %v462 = vadd.f32 %v367, %v461
    %v463 = vpop.f32.mrb[0].mxu0
    %v464 = vadd.f32 %v367, %v463
    %465 = vmatprep.mubr.f32.mxu0 0.0
    %466 = vmatmul.mubr.f32.gmra.mrb[0].mxu0 %v381
    %v467 = vpop.f32.mrb[0].mxu0
    %v468 = vadd.f32 %v372, %v467
    %v469 = vpop.f32.mrb[0].mxu0
    %v470 = vadd.f32 %v372, %v469
    %471 = vdwg.mxu0
    %v472 = vxor.u32 %v456, 2147483648
    %v473 = vxor.u32 %v458, 2147483648
    %v474 = vxor.u32 %v462, 2147483648
    %v475 = vxor.u32 %v464, 2147483648
    %v476 = vxor.u32 %v468, 2147483648
    %v477 = vxor.u32 %v470, 2147483648
    %v478 = vmul.f32 %v472, 1.442695
    %v479 = vpow.pop %v478
    %v480 = vmul.f32 %v473, 1.442695
    %v481 = vpow.pop %v480
    %v482 = vmul.f32 %v474, 1.442695
    %v483 = vpow.pop %v482
    %v484 = vmul.f32 %v475, 1.442695
    %v485 = vpow.pop %v484
    %v486 = vmul.f32 %v476, 1.442695
    %v487 = vpow.pop %v486
    %v488 = vmul.f32 %v477, 1.442695
    %v489 = vpow.pop %v488
    %v490 = vadd.f32 %v479, 1.0
    %v491 = vadd.f32 %v481, 1.0
    %v492 = vadd.f32 %v483, 1.0
    %v493 = vadd.f32 %v485, 1.0
    %v494 = vadd.f32 %v487, 1.0
    %v495 = vadd.f32 %v489, 1.0
    %v496 = vrcp.pop %v490
    %v497 = vmul.f32 1.0, %v496
    %v498 = vrcp.pop %v491
    %v499 = vmul.f32 1.0, %v498
    %v500 = vrcp.pop %v492
    %v501 = vmul.f32 1.0, %v500
    %v502 = vrcp.pop %v493
    %v503 = vmul.f32 1.0, %v502
    %v504 = vrcp.pop %v494
    %v505 = vmul.f32 1.0, %v504
    %v506 = vrcp.pop %v495
    %v507 = vmul.f32 1.0, %v506
    %508 = vst [vmem:[#allocation4] sm:$0xff] %v497
    %509 = vst [vmem:[#allocation4 + $0x8] sm:$0xff] %v499
    %510 = vst [vmem:[#allocation4 + $0x10] sm:$0xff] %v501
    %511 = vst [vmem:[#allocation4 + $0x18] sm:$0xff] %v503
    %512 = vst [vmem:[#allocation4 + $0x20] sm:$0x7] %v505
    %513 = vst [vmem:[#allocation4 + $0x28] sm:$0x7] %v507
    // Predicated region
    $region38: #{tpu_custom_call.1} parent=1 // pred_check
      _
    $region39: #{tpu_custom_call.1} parent=1 // pred_check_branch
      %515 = sbr.rel (0) target = $region41
    $region40: #{tpu_custom_call.1} parent=1 // pred_region
      %s517 = ssub.s32 256, 256
      %518 = vsyncadd [#allocation3], %s517
      %s520 = sshll.u32 [#allocation2], 4
      %s521 = int_to_ptr.vmem [resolvable:$true] %s520
      %523 = dma.vmem_to_hbm [thread:$0]  %s521, 256, %s9, [#allocation3]
    $region41: #{tpu_custom_call.1} parent=1 // pred_fallthru
      _
    // Predicated region
    $region42: #{tpu_custom_call.1} parent=1 // pred_check
      _
    $region43: #{tpu_custom_call.1} parent=1 // pred_check_branch
      %525 = sbr.rel (0) target = $region45
    $region44: #{tpu_custom_call.1} parent=1 // pred_region
      %s527 = ssub.s32 768, 768
      %528 = vsyncadd [#allocation5], %s527
      %s529 = sshll.u32 [#allocation4], 4
      %s530 = int_to_ptr.vmem [resolvable:$true] %s529
      %535 = dma.vmem_to_hbm [thread:$0]  %s530, 768, %s10, [#allocation5], 256, 256, 16
    $region45: #{tpu_custom_call.1} parent=1 // pred_fallthru
      _
    // Predicated region
    $region46: #{tpu_custom_call.1} parent=1 // pred_check
      _
    $region47: #{tpu_custom_call.1} parent=1 // pred_check_branch
      %537 = sbr.rel (0) target = $region49
    $region48: #{tpu_custom_call.1} parent=1 // pred_region
      %538 = dma.done [#allocation3], 256
    $region49: #{tpu_custom_call.1} parent=1 // pred_fallthru
      _
    // Predicated region
    $region50: #{tpu_custom_call.1} parent=1 // pred_check
      _
    $region51: #{tpu_custom_call.1} parent=1 // pred_check_branch
      %540 = sbr.rel (0) target = $region53
    $region52: #{tpu_custom_call.1} parent=1 // pred_region
      %541 = dma.done [#allocation5], 768
    $region53: #{tpu_custom_call.1} parent=1 // pred_fallthru
      _
    %542 = vsyncpa [#allocation3], 1
    %543 = vsyncpa [#allocation5], 1

</llo_original>
